<compile_context>
chip_gen: v6e
topology: v6e:2x2x1
jax: 0.10.0
libtpu: 0.0.40
codegen_flags: <defaults>
</compile_context>

<pallas_src>
import functools

import jax
import jax.numpy as jnp
from jax import lax
from jax.experimental import pallas as pl
from jax.experimental.pallas import tpu as pltpu


def _contrastive_loss_kernel(predict_ref, gt_ref, loss_ref, gram_ref, *,
                             margin, batch, dim, tile_d):
    k = pl.program_id(0)
    last = pl.num_programs(0) - 1

    @pl.when(k == 0)
    def _init():
        gram_ref[...] = jnp.zeros_like(gram_ref)

    def _accumulate(p):
        # Contract the LAST dim of both operands on the MXU (no materialized
        # transpose of predict); accumulate in f32 regardless of input dtype.
        gram_ref[...] += lax.dot_general(
            p, p,
            dimension_numbers=(((1,), (1,)), ((), ())),
            preferred_element_type=jnp.float32,
        )

    rem = dim % tile_d
    if rem == 0:
        _accumulate(predict_ref[...])
    else:
        # Only the last grid step sees a partial tile; zero its tail columns
        # so the out-of-bounds (unspecified) VMEM contents never touch the Gram.
        @pl.when(k != last)
        def _full_tile():
            _accumulate(predict_ref[...])

        @pl.when(k == last)
        def _partial_tile():
            p = predict_ref[...]
            col = lax.broadcasted_iota(jnp.int32, p.shape, 1)
            _accumulate(jnp.where(col < rem, p, jnp.zeros_like(p)))

    @pl.when(k == last)
    def _finalize():
        gram = gram_ref[...]                                      # (B, B) f32
        row = lax.broadcasted_iota(jnp.int32, (batch, batch), 0)
        col = lax.broadcasted_iota(jnp.int32, (batch, batch), 1)

        # ||p_i||^2 straight from the Gram diagonal (no second pass over predict).
        norms = jnp.sum(jnp.where(row == col, gram, 0.0), axis=1,
                        keepdims=True)                            # (B, 1)
        dist = (norms + jnp.transpose(norms) - 2.0 * gram) * jnp.float32(1.0 / dim)
        # Guard the Gram-formulation cancellation case (reference dist >= 0).
        dist = jnp.maximum(dist, 0.0)

        gt = gt_ref[...]                                          # (1, B) int32
        label = (jnp.transpose(gt) == gt).astype(jnp.float32)     # (B, B)

        # Strict upper triangle: the reference's i == j terms are exactly zero
        # (label == 1, dist == 0), so excluding the diagonal matches PyTorch.
        tri = (col > row).astype(jnp.float32)
        contrib = label * dist + (1.0 - label) * jnp.maximum(
            jnp.float32(margin) - dist, 0.0)
        total = jnp.sum(tri * contrib)
        # NB: like the PyTorch reference, batch == 1 divides by zero.
        loss_ref[0, 0] = 2.0 * total / jnp.float32(batch * (batch - 1))


# Keep the double-buffered predict stream inside ~16 MiB so the explicit
# vmem_limit stays well under v7x's 64 MiB physical VMEM (32 MiB default) and
# only modestly above v5e's 16 MiB default scoped VMEM.
_INPUT_STREAM_BUDGET = 16 << 20   # total for the two predict buffers
_VMEM_LIMIT_CAP = 40 << 20        # never ask Mosaic for more than this


def _pick_tile_d(batch, dim, itemsize, input_budget_bytes=_INPUT_STREAM_BUDGET):
    """Largest lane-aligned D tile whose double-buffered (batch, tile_d) input
    fits the streaming budget.  Big tiles amortize the ~0.35 us/grid-step
    pipeline overhead and make each of the `batch` DMA row segments a large
    contiguous transfer."""
    d128 = pl.cdiv(dim, 128) * 128
    per_buffer = input_budget_bytes // 2
    by_vmem = max(128, (per_buffer // (max(batch, 1) * itemsize)) // 128 * 128)
    return int(min(d128, by_vmem))


def contrastive_loss(predict, gt, margin=2.0, tile_d=None):
    """predict: (B, C, H, W) or (B, D); gt: (B,) integer labels. Returns scalar f32."""
    batch = predict.shape[0]
    pred2d = predict.reshape(batch, -1)
    # Stream native low-precision floats; only non-float inputs get cast.
    if pred2d.dtype not in (jnp.float32, jnp.bfloat16, jnp.float16):
        pred2d = pred2d.astype(jnp.float32)
    dim = pred2d.shape[1]
    itemsize = pred2d.dtype.itemsize

    if tile_d is None:
        tile_d = _pick_tile_d(batch, dim, itemsize)
    assert tile_d % 128 == 0, "tile_d must be lane-aligned (multiple of 128)"

    gt2d = jnp.asarray(gt).reshape(1, batch).astype(jnp.int32)

    grid = (pl.cdiv(dim, tile_d),)

    # Explicit scoped-VMEM limit: double-buffered predict tile + Gram scratch
    # + headroom. Floor at the smallest generation default, cap below v7x HW.
    tile_bytes = batch * tile_d * itemsize
    vmem_limit = int(min(
        max(2 * tile_bytes + batch * batch * 4 + (4 << 20), 16 << 20),
        _VMEM_LIMIT_CAP))

    cost = pl.CostEstimate(
        flops=2 * batch * batch * dim,
        transcendentals=0,
        bytes_accessed=batch * dim * itemsize + batch * 4 + 4,
    )

    out = pl.pallas_call(
        functools.partial(_contrastive_loss_kernel, margin=float(margin),
                          batch=batch, dim=dim, tile_d=tile_d),
        out_shape=jax.ShapeDtypeStruct((1, 1), jnp.float32),
        grid_spec=pltpu.PrefetchScalarGridSpec(
            num_scalar_prefetch=0,
            grid=grid,
            in_specs=[
                pl.BlockSpec((batch, tile_d), lambda k: (0, k)),
                pl.BlockSpec((1, batch), lambda k: (0, 0)),
            ],
            # Scalar result: keep it in SMEM (no lane-masked VMEM store).
            out_specs=pl.BlockSpec(memory_space=pltpu.MemorySpace.SMEM),
            scratch_shapes=[pltpu.VMEM((batch, batch), jnp.float32)],
        ),
        compiler_params=pltpu.CompilerParams(
            dimension_semantics=("arbitrary",),
            vmem_limit_bytes=vmem_limit),
        cost_estimate=cost,
    )(pred2d, gt2d)
    return out[0, 0]


def _reference_loss(predict, gt, margin=2.0):
    """Pure-Python reference mirroring the PyTorch double loop."""
    p = jnp.asarray(predict).reshape(predict.shape[0], -1).astype(jnp.float32)
    B, D = p.shape
    loss = 0.0
    for i in range(B):
        for j in range(i, B):
            label = 1.0 if int(gt[i]) == int(gt[j]) else 0.0
            dist = float(jnp.sum((p[i] - p[j]) ** 2)) / D
            loss += label * dist + (1.0 - label) * max(margin - dist, 0.0)
    return 2.0 * loss / (B * (B - 1))


if __name__ == "__main__":
    key = jax.random.PRNGKey(0)
    k1, k2, k3, k4, k5, k6 = jax.random.split(key, 6)

    # Case 1: NCHW f32 input as the module's forward implies (single big tile).
    B, C, H, W = 4, 4, 16, 16
    predict = jax.random.normal(k1, (B, C, H, W), dtype=jnp.float32)
    gt = jax.random.randint(k2, (B,), 0, 2, dtype=jnp.int32)
    loss = contrastive_loss(predict, gt, margin=2.0)
    jax.block_until_ready(loss)
    ref = _reference_loss(predict, gt, margin=2.0)
    assert abs(float(loss) - ref) <= 2e-3 * max(1.0, abs(ref)), (float(loss), ref)

    # Case 2: D not a multiple of the (forced small) tile -> multi-step
    # reduction grid + in-kernel tail masking path.
    B2, D2 = 4, 320
    predict2 = jax.random.normal(k3, (B2, D2), dtype=jnp.float32)
    gt2 = jax.random.randint(k4, (B2,), 0, 3, dtype=jnp.int32)
    loss2 = contrastive_loss(predict2, gt2, margin=2.0, tile_d=128)
    jax.block_until_ready(loss2)
    ref2 = _reference_loss(predict2, gt2, margin=2.0)
    assert abs(float(loss2) - ref2) <= 2e-3 * max(1.0, abs(ref2)), (float(loss2), ref2)

    # Case 3: bf16 input streams in its native dtype (half the HBM traffic).
    predict3 = jax.random.normal(k5, (4, 8, 8, 8), dtype=jnp.bfloat16)
    gt3 = jax.random.randint(k6, (4,), 0, 2, dtype=jnp.int32)
    loss3 = contrastive_loss(predict3, gt3, margin=2.0)
    jax.block_until_ready(loss3)
    ref3 = _reference_loss(predict3, gt3, margin=2.0)
    assert abs(float(loss3) - ref3) <= 5e-2 * max(1.0, abs(ref3)), (float(loss3), ref3)

    print("KERNEL_OK")
</pallas_src>

<mosaic_0001>
module attributes {stable_mosaic.version = 11 : i64} {
  func.func @_contrastive_loss_kernel(%arg0: i32, %arg1: memref<4x1024xf32, #tpu.memory_space<vmem>>, %arg2: memref<1x4xi32, #tpu.memory_space<vmem>>, %arg3: memref<1x1xf32, #tpu.memory_space<smem>>, %arg4: memref<4x4xf32, #tpu.memory_space<vmem>>) attributes {dimension_semantics = [#tpu.dimension_semantics<arbitrary>], iteration_bounds = array<i64: 1>, scalar_prefetch = 0 : i64, scratch_operands = 1 : i64, tpu.core_type = #tpu.core_type<tc>, window_params = [{transform_indices = @transform_0, window_bounds = array<i64: 4, 1024>}, {pipeline_mode = #tpu.pipeline_mode<synchronous>, transform_indices = @transform_1, window_bounds = array<i64: 1, 4>}, {transform_indices = @transform_2, window_bounds = array<i64: 1, 1>}]} {
    %c0_i32 = arith.constant 0 : i32
    %0 = arith.cmpi eq, %arg0, %c0_i32 : i32
    %1 = arith.extui %0 : i1 to i32
    %c0_i32_0 = arith.constant 0 : i32
    %2 = arith.cmpi ne, %1, %c0_i32_0 : i32
    scf.if %2 {
      %cst_8 = arith.constant 0.000000e+00 : f32
      %11 = vector.broadcast %cst_8 : f32 to vector<4x4xf32>
      %c0_9 = arith.constant 0 : index
      %c0_10 = arith.constant 0 : index
      %12 = vector.load %arg4[%c0_9, %c0_10] : memref<4x4xf32, #tpu.memory_space<vmem>>, vector<4x4xf32>
      tpu.vector_store %arg4[%c0_9, %c0_10], %11 {strides = array<i32>} : memref<4x4xf32, #tpu.memory_space<vmem>>, vector<4x4xf32>,
    } else {
    }
    %c0 = arith.constant 0 : index
    %c0_1 = arith.constant 0 : index
    %3 = vector.load %arg1[%c0, %c0_1] : memref<4x1024xf32, #tpu.memory_space<vmem>>, vector<4x1024xf32>
    %c0_2 = arith.constant 0 : index
    %c0_3 = arith.constant 0 : index
    %4 = vector.load %arg4[%c0_2, %c0_3] : memref<4x4xf32, #tpu.memory_space<vmem>>, vector<4x4xf32>
    %cst = arith.constant dense<0.000000e+00> : vector<4x4xf32>
    %5 = tpu.matmul %3, %3, %cst {dimension_numbers = #tpu.dot_dimension_numbers<[1], [1], [0], [0], [0, 0, 1, 0], [], []>} : vector<4x1024xf32>, vector<4x1024xf32>, vector<4x4xf32> -> vector<4x4xf32>
    %6 = arith.addf %4, %5 : vector<4x4xf32>
    %c0_4 = arith.constant 0 : index
    %c0_5 = arith.constant 0 : index
    %7 = vector.load %arg4[%c0_4, %c0_5] : memref<4x4xf32, #tpu.memory_space<vmem>>, vector<4x4xf32>
    tpu.vector_store %arg4[%c0_4, %c0_5], %6 {strides = array<i32>} : memref<4x4xf32, #tpu.memory_space<vmem>>, vector<4x4xf32>,
    %c0_i32_6 = arith.constant 0 : i32
    %8 = arith.cmpi eq, %arg0, %c0_i32_6 : i32
    %9 = arith.extui %8 : i1 to i32
    %c0_i32_7 = arith.constant 0 : i32
    %10 = arith.cmpi ne, %9, %c0_i32_7 : i32
    scf.if %10 {
      %c0_8 = arith.constant 0 : index
      %c0_9 = arith.constant 0 : index
      %11 = vector.load %arg4[%c0_8, %c0_9] : memref<4x4xf32, #tpu.memory_space<vmem>>, vector<4x4xf32>
      %12 = tpu.iota {dimensions = array<i32: 0>} : vector<4x4xi32>
      %13 = tpu.iota {dimensions = array<i32: 1>} : vector<4x4xi32>
      %14 = arith.cmpi eq, %12, %13 : vector<4x4xi32>
      %cst_10 = arith.constant 0.000000e+00 : f32
      %15 = vector.broadcast %cst_10 : f32 to vector<4x4xf32>
      %16 = arith.select %14, %11, %15 : vector<4x4xi1>, vector<4x4xf32>
      %cst_11 = arith.constant dense<0.000000e+00> : vector<4xf32>
      %17 = vector.multi_reduction <add>, %16, %cst_11 [1] : vector<4x4xf32> to vector<4xf32>
      %18 = vector.shape_cast %17 : vector<4xf32> to vector<4x1xf32>
      %19 = tpu.transpose %18, [1, 0] : vector<4x1xf32> -> vector<1x4xf32>
      %20 = vector.broadcast %18 : vector<4x1xf32> to vector<4x4xf32>
      %21 = vector.broadcast %19 : vector<1x4xf32> to vector<4x4xf32>
      %22 = arith.addf %20, %21 : vector<4x4xf32>
      %cst_12 = arith.constant 2.000000e+00 : f32
      %23 = vector.broadcast %cst_12 : f32 to vector<4x4xf32>
      %24 = arith.mulf %23, %11 : vector<4x4xf32>
      %25 = arith.subf %22, %24 : vector<4x4xf32>
      %cst_13 = arith.constant 9.765625E-4 : f32
      %26 = vector.broadcast %cst_13 : f32 to vector<4x4xf32>
      %27 = arith.mulf %25, %26 : vector<4x4xf32>
      %cst_14 = arith.constant 0.000000e+00 : f32
      %28 = vector.broadcast %cst_14 : f32 to vector<4x4xf32>
      %29 = arith.maximumf %27, %28 : vector<4x4xf32>
      %c0_15 = arith.constant 0 : index
      %c0_16 = arith.constant 0 : index
      %30 = vector.load %arg2[%c0_15, %c0_16] : memref<1x4xi32, #tpu.memory_space<vmem>>, vector<1x4xi32>
      %31 = tpu.transpose %30, [1, 0] : vector<1x4xi32> -> vector<4x1xi32>
      %32 = vector.broadcast %31 : vector<4x1xi32> to vector<4x4xi32>
      %33 = vector.broadcast %30 : vector<1x4xi32> to vector<4x4xi32>
      %34 = arith.cmpi eq, %32, %33 : vector<4x4xi32>
      %35 = arith.extui %34 : vector<4x4xi1> to vector<4x4xi32>
      %36 = arith.sitofp %35 : vector<4x4xi32> to vector<4x4xf32>
      %37 = arith.cmpi sgt, %13, %12 : vector<4x4xi32>
      %38 = arith.extui %37 : vector<4x4xi1> to vector<4x4xi32>
      %39 = arith.sitofp %38 : vector<4x4xi32> to vector<4x4xf32>
      %40 = arith.mulf %36, %29 : vector<4x4xf32>
      %cst_17 = arith.constant 1.000000e+00 : f32
      %41 = vector.broadcast %cst_17 : f32 to vector<4x4xf32>
      %42 = arith.subf %41, %36 : vector<4x4xf32>
      %cst_18 = arith.constant 2.000000e+00 : f32
      %43 = vector.broadcast %cst_18 : f32 to vector<4x4xf32>
      %44 = arith.subf %43, %29 : vector<4x4xf32>
      %cst_19 = arith.constant 0.000000e+00 : f32
      %45 = vector.broadcast %cst_19 : f32 to vector<4x4xf32>
      %46 = arith.maximumf %44, %45 : vector<4x4xf32>
      %47 = arith.mulf %42, %46 : vector<4x4xf32>
      %48 = arith.addf %40, %47 : vector<4x4xf32>
      %49 = arith.mulf %39, %48 : vector<4x4xf32>
      %50 = vector.shape_cast %49 : vector<4x4xf32> to vector<1x4x4xf32>
      %cst_20 = arith.constant dense<0.000000e+00> : vector<1xf32>
      %51 = vector.multi_reduction <add>, %50, %cst_20 [1, 2] : vector<1x4x4xf32> to vector<1xf32>
      %52 = vector.shape_cast %51 : vector<1xf32> to vector<1x1x1xf32>
      %53 = vector.extract %52[0, 0, 0] : f32 from vector<1x1x1xf32>
      %cst_21 = arith.constant 2.000000e+00 : f32
      %54 = arith.mulf %cst_21, %53 : f32
      %cst_22 = arith.constant 1.200000e+01 : f32
      %55 = arith.divf %54, %cst_22 : f32
      %c0_23 = arith.constant 0 : index
      %c0_24 = arith.constant 0 : index
      %56 = memref.load %arg3[%c0_23, %c0_24] : memref<1x1xf32, #tpu.memory_space<smem>>
      memref.store %55, %arg3[%c0_23, %c0_24] : memref<1x1xf32, #tpu.memory_space<smem>>
    } else {
    }
    return
  }
  func.func @transform_0(%arg0: i32) -> (i32, i32) {
    %c0_i32 = arith.constant 0 : i32
    %c0_i32_0 = arith.constant 0 : i32
    return %c0_i32, %arg0 : i32, i32
  }
  func.func @transform_1(%arg0: i32) -> (i32, i32) {
    %c0_i32 = arith.constant 0 : i32
    %c0_i32_0 = arith.constant 0 : i32
    %c0_i32_1 = arith.constant 0 : i32
    return %c0_i32, %c0_i32_0 : i32, i32
  }
  func.func @transform_2(%arg0: i32) -> (i32, i32) {
    %c0_i32 = arith.constant 0 : i32
    %c0_i32_0 = arith.constant 0 : i32
    %c0_i32_1 = arith.constant 0 : i32
    return %c0_i32, %c0_i32_0 : i32, i32
  }
}

</mosaic_0001>

<llo_original>
// kernel: tpu_custom_call.1
$region0: #{tpu_custom_call.1}
  #allocation0 [shape = 'u32[]', space=smem, size = 0x4, offset = 0x4, fixed_abs, tag = 'smem constant byte address 0x4 - core index']
  #allocation1 [shape = 'u32[144,128]{1,0:T(1,128)}', space=vmem, size = 0x12000, scoped, tag = 'internal scratch']
  #allocation2 [shape = 'f32[4,4]{1,0:T(4,128)}', space=vmem, size = 0x800, scoped, tag = 'scratch operand']
  %s0 = inlined_call_operand.hbm [shape: f32[4,1024], index: 0, kind: input, shape index: {}]
  %s1 = inlined_call_operand.vmem [shape: s32[1,4], index: 1, kind: input, shape index: {}]
  %s2 = inlined_call_operand.hbm [shape: f32[1,1], index: 2, kind: output, shape index: {}]
  %s3 = sld [smem:[#allocation0]]
  $region30: #{tpu_custom_call.1} parent=0
    _
  %s5 = ssub.s32 1, %s3
  %s6 = scalar_select 0, %s5, %s3
  $region1: #{tpu_custom_call.1} parent=0
    #allocation3 [shape = 'u8[16384]{0}', space=vmem, size = 0x4000, scoped, tag = 'input window, operand 0, single buffered']
    #allocation4 [shape = 's32[1]{0}', space=sflag, size = 0x4, scoped, tag = 'scoped memory for tpu_custom_call.1']
    #allocation5 [shape = 's32[1]{0}', space=sflag, size = 0x4, scoped, tag = 'scoped memory for tpu_custom_call.1']
    #allocation6 [shape = 'u8[512]{0}', space=smem, size = 0x200, scoped, tag = 'output window, operand 0, single buffered']
    %7 = vsyncpa [#allocation4], 0
    %8 = vsyncpa [#allocation5], 0
    // Predicated region
    $region2: #{tpu_custom_call.1} parent=1 // pred_check
      _
    $region3: #{tpu_custom_call.1} parent=1 // pred_check_branch
      %10 = sbr.rel (0) target = $region5
    $region4: #{tpu_custom_call.1} parent=1 // pred_region
      %s12 = ssub.s32 512, 512
      %13 = vsyncadd [#allocation4], %s12
      %s15 = sshll.u32 [#allocation3], 4
      %s16 = int_to_ptr.vmem [resolvable:$true] %s15
      %18 = dma.hbm_to_vmem [thread:$0]  %s0, 512, %s16, [#allocation4]
    $region5: #{tpu_custom_call.1} parent=1 // pred_fallthru
      _
    // Predicated region
    $region6: #{tpu_custom_call.1} parent=1 // pred_check
      _
    $region7: #{tpu_custom_call.1} parent=1 // pred_check_branch
      %20 = sbr.rel (0) target = $region9
    $region8: #{tpu_custom_call.1} parent=1 // pred_region
      _
    $region9: #{tpu_custom_call.1} parent=1 // pred_fallthru
      _
    // Predicated region
    $region10: #{tpu_custom_call.1} parent=1 // pred_check
      _
    $region11: #{tpu_custom_call.1} parent=1 // pred_check_branch
      %22 = sbr.rel (0) target = $region13
    $region12: #{tpu_custom_call.1} parent=1 // pred_region
      %23 = dma.done [#allocation4], 512
    $region13: #{tpu_custom_call.1} parent=1 // pred_fallthru
      _
    %p24 = scmp.eq.s32.totalorder 0, 0
    // Predicated region
    $region14: #{tpu_custom_call.1} parent=1 // pred_check
      %p25 = pneg %p24
    $region15: #{tpu_custom_call.1} parent=1 // pred_check_branch
      %27 = sbr.rel (%p25) target = $region17
    $region16: #{tpu_custom_call.1} parent=1 // pred_region
      %vm28 = vcmask 27648
      %29 = vst.msk [vmem:[#allocation2] sm:$0xf] %vm28, 0.0
    $region17: #{tpu_custom_call.1} parent=1 // pred_fallthru
      _
    %v30 = vld [vmem:[#allocation3] sm:$0xff]
    %v31 = vld [vmem:[#allocation3 + $0x8] sm:$0xff]
    %v32 = vld [vmem:[#allocation3 + $0x10] sm:$0xff]
    %v33 = vld [vmem:[#allocation3 + $0x18] sm:$0xff]
    %v34 = vld [vmem:[#allocation2] sm:$0xf]
    %v39 = vcombine.high %v30, %v30
    %v40 = vcombine.high %v31, %v31
    %v41 = vcombine.high %v32, %v32
    %v42 = vcombine.high %v33, %v33
    %47 = vmatprep.subr.mxu0 0.0
    %48 = vmatpush1.xpose.msra.mxu0 0.0
    %49 = vmatprep.subr.mxu0 0.0
    %50 = vmatpush1.xpose.msra.mxu0 0.0
    %51 = vmatprep.subr.mxu0 0.0
    %52 = vmatpush1.xpose.msra.mxu0 0.0
    %53 = vmatprep.subr.mxu0 0.0
    %54 = vmatpush1.xpose.msra.mxu0 0.0
    %55 = vmatprep.subr.mxu0 0.0
    %56 = vmatpush1.xpose.msra.mxu0 0.0
    %57 = vmatprep.subr.mxu0 0.0
    %58 = vmatpush1.xpose.msra.mxu0 0.0
    %59 = vmatprep.subr.mxu0 0.0
    %60 = vmatpush1.xpose.msra.mxu0 0.0
    %61 = vmatprep.subr.mxu0 0.0
    %62 = vmatpush1.xpose.msra.mxu0 0.0
    %63 = vmatprep.subr.mxu0 0.0
    %64 = vmatpush1.xpose.msra.mxu0 0.0
    %65 = vmatprep.subr.mxu0 0.0
    %66 = vmatpush1.xpose.msra.mxu0 0.0
    %67 = vmatprep.subr.mxu0 0.0
    %68 = vmatpush1.xpose.msra.mxu0 0.0
    %69 = vmatprep.subr.mxu0 0.0
    %70 = vmatpush1.xpose.msra.mxu0 0.0
    %71 = vmatprep.subr.mxu0 0.0
    %72 = vmatpush1.xpose.msra.mxu0 0.0
    %73 = vmatprep.subr.mxu0 0.0
    %74 = vmatpush1.xpose.msra.mxu0 0.0
    %75 = vmatprep.subr.mxu0 0.0
    %76 = vmatpush1.xpose.msra.mxu0 0.0
    %77 = vmatprep.subr.mxu0 %v39
    %78 = vmatpush1.xpose.msra.mxu0 %v30
    %79 = vmatprep.subr.mxu0 0.0
    %80 = vmatpush2.xpose.msra.mxu0 0.0
    %81 = vmatprep.subr.mxu0 0.0
    %82 = vmatpush2.xpose.msra.mxu0 0.0
    %83 = vmatprep.subr.mxu0 0.0
    %84 = vmatpush2.xpose.msra.mxu0 0.0
    %85 = vmatprep.subr.mxu0 0.0
    %86 = vmatpush2.xpose.msra.mxu0 0.0
    %87 = vmatprep.subr.mxu0 0.0
    %88 = vmatpush2.xpose.msra.mxu0 0.0
    %89 = vmatprep.subr.mxu0 0.0
    %90 = vmatpush2.xpose.msra.mxu0 0.0
    %91 = vmatprep.subr.mxu0 0.0
    %92 = vmatpush2.xpose.msra.mxu0 0.0
    %93 = vmatprep.subr.mxu0 0.0
    %94 = vmatpush2.xpose.msra.mxu0 0.0
    %95 = vmatprep.subr.mxu0 0.0
    %96 = vmatpush2.xpose.msra.mxu0 0.0
    %97 = vmatprep.subr.mxu0 0.0
    %98 = vmatpush2.xpose.msra.mxu0 0.0
    %99 = vmatprep.subr.mxu0 0.0
    %100 = vmatpush2.xpose.msra.mxu0 0.0
    %101 = vmatprep.subr.mxu0 0.0
    %102 = vmatpush2.xpose.msra.mxu0 0.0
    %103 = vmatprep.subr.mxu0 0.0
    %104 = vmatpush2.xpose.msra.mxu0 0.0
    %105 = vmatprep.subr.mxu0 0.0
    %106 = vmatpush2.xpose.msra.mxu0 0.0
    %107 = vmatprep.subr.mxu0 0.0
    %108 = vmatpush2.xpose.msra.mxu0 0.0
    %109 = vmatprep.subr.mxu0 0.0
    %110 = vmatpush2.xpose.msra.mxu0 0.0
    %111 = vmatprep.mubr.f32.mxu0 %v39
    %112 = vmatmul.mubr.f32.gmra.mxu0 %v30
    %v113 = vpop.f32.mrf.mxu0
    %v114 = vadd.f32 0.0, %v113
    %v115 = vpop.f32.mrf.mxu0
    %116 = vdwg.mxu0
    %117 = vmatprep.subr.mxu0 0.0
    %118 = vmatpush1.xpose.msra.mxu0 0.0
    %119 = vmatprep.subr.mxu0 0.0
    %120 = vmatpush1.xpose.msra.mxu0 0.0
    %121 = vmatprep.subr.mxu0 0.0
    %122 = vmatpush1.xpose.msra.mxu0 0.0
    %123 = vmatprep.subr.mxu0 0.0
    %124 = vmatpush1.xpose.msra.mxu0 0.0
    %125 = vmatprep.subr.mxu0 0.0
    %126 = vmatpush1.xpose.msra.mxu0 0.0
    %127 = vmatprep.subr.mxu0 0.0
    %128 = vmatpush1.xpose.msra.mxu0 0.0
    %129 = vmatprep.subr.mxu0 0.0
    %130 = vmatpush1.xpose.msra.mxu0 0.0
    %131 = vmatprep.subr.mxu0 0.0
    %132 = vmatpush1.xpose.msra.mxu0 0.0
    %133 = vmatprep.subr.mxu0 0.0
    %134 = vmatpush1.xpose.msra.mxu0 0.0
    %135 = vmatprep.subr.mxu0 0.0
    %136 = vmatpush1.xpose.msra.mxu0 0.0
    %137 = vmatprep.subr.mxu0 0.0
    %138 = vmatpush1.xpose.msra.mxu0 0.0
    %139 = vmatprep.subr.mxu0 0.0
    %140 = vmatpush1.xpose.msra.mxu0 0.0
    %141 = vmatprep.subr.mxu0 0.0
    %142 = vmatpush1.xpose.msra.mxu0 0.0
    %143 = vmatprep.subr.mxu0 0.0
    %144 = vmatpush1.xpose.msra.mxu0 0.0
    %145 = vmatprep.subr.mxu0 0.0
    %146 = vmatpush1.xpose.msra.mxu0 0.0
    %147 = vmatprep.subr.mxu0 %v40
    %148 = vmatpush1.xpose.msra.mxu0 %v31
    %149 = vmatprep.subr.mxu0 0.0
    %150 = vmatpush2.xpose.msra.mxu0 0.0
    %151 = vmatprep.subr.mxu0 0.0
    %152 = vmatpush2.xpose.msra.mxu0 0.0
    %153 = vmatprep.subr.mxu0 0.0
    %154 = vmatpush2.xpose.msra.mxu0 0.0
    %155 = vmatprep.subr.mxu0 0.0
    %156 = vmatpush2.xpose.msra.mxu0 0.0
    %157 = vmatprep.subr.mxu0 0.0
    %158 = vmatpush2.xpose.msra.mxu0 0.0
    %159 = vmatprep.subr.mxu0 0.0
    %160 = vmatpush2.xpose.msra.mxu0 0.0
    %161 = vmatprep.subr.mxu0 0.0
    %162 = vmatpush2.xpose.msra.mxu0 0.0
    %163 = vmatprep.subr.mxu0 0.0
    %164 = vmatpush2.xpose.msra.mxu0 0.0
    %165 = vmatprep.subr.mxu0 0.0
    %166 = vmatpush2.xpose.msra.mxu0 0.0
    %167 = vmatprep.subr.mxu0 0.0
    %168 = vmatpush2.xpose.msra.mxu0 0.0
    %169 = vmatprep.subr.mxu0 0.0
    %170 = vmatpush2.xpose.msra.mxu0 0.0
    %171 = vmatprep.subr.mxu0 0.0
    %172 = vmatpush2.xpose.msra.mxu0 0.0
    %173 = vmatprep.subr.mxu0 0.0
    %174 = vmatpush2.xpose.msra.mxu0 0.0
    %175 = vmatprep.subr.mxu0 0.0
    %176 = vmatpush2.xpose.msra.mxu0 0.0
    %177 = vmatprep.subr.mxu0 0.0
    %178 = vmatpush2.xpose.msra.mxu0 0.0
    %179 = vmatprep.subr.mxu0 0.0
    %180 = vmatpush2.xpose.msra.mxu0 0.0
    %181 = vmatprep.mubr.f32.mxu0 %v40
    %182 = vmatmul.mubr.f32.gmra.mxu0 %v31
    %v183 = vpop.f32.mrf.mxu0
    %v184 = vadd.f32 %v114, %v183
    %v185 = vpop.f32.mrf.mxu0
    %186 = vdwg.mxu0
    %187 = vmatprep.subr.mxu0 0.0
    %188 = vmatpush1.xpose.msra.mxu0 0.0
    %189 = vmatprep.subr.mxu0 0.0
    %190 = vmatpush1.xpose.msra.mxu0 0.0
    %191 = vmatprep.subr.mxu0 0.0
    %192 = vmatpush1.xpose.msra.mxu0 0.0
    %193 = vmatprep.subr.mxu0 0.0
    %194 = vmatpush1.xpose.msra.mxu0 0.0
    %195 = vmatprep.subr.mxu0 0.0
    %196 = vmatpush1.xpose.msra.mxu0 0.0
    %197 = vmatprep.subr.mxu0 0.0
    %198 = vmatpush1.xpose.msra.mxu0 0.0
    %199 = vmatprep.subr.mxu0 0.0
    %200 = vmatpush1.xpose.msra.mxu0 0.0
    %201 = vmatprep.subr.mxu0 0.0
    %202 = vmatpush1.xpose.msra.mxu0 0.0
    %203 = vmatprep.subr.mxu0 0.0
    %204 = vmatpush1.xpose.msra.mxu0 0.0
    %205 = vmatprep.subr.mxu0 0.0
    %206 = vmatpush1.xpose.msra.mxu0 0.0
    %207 = vmatprep.subr.mxu0 0.0
    %208 = vmatpush1.xpose.msra.mxu0 0.0
    %209 = vmatprep.subr.mxu0 0.0
    %210 = vmatpush1.xpose.msra.mxu0 0.0
    %211 = vmatprep.subr.mxu0 0.0
    %212 = vmatpush1.xpose.msra.mxu0 0.0
    %213 = vmatprep.subr.mxu0 0.0
    %214 = vmatpush1.xpose.msra.mxu0 0.0
    %215 = vmatprep.subr.mxu0 0.0
    %216 = vmatpush1.xpose.msra.mxu0 0.0
    %217 = vmatprep.subr.mxu0 %v41
    %218 = vmatpush1.xpose.msra.mxu0 %v32
    %219 = vmatprep.subr.mxu0 0.0
    %220 = vmatpush2.xpose.msra.mxu0 0.0
    %221 = vmatprep.subr.mxu0 0.0
    %222 = vmatpush2.xpose.msra.mxu0 0.0
    %223 = vmatprep.subr.mxu0 0.0
    %224 = vmatpush2.xpose.msra.mxu0 0.0
    %225 = vmatprep.subr.mxu0 0.0
    %226 = vmatpush2.xpose.msra.mxu0 0.0
    %227 = vmatprep.subr.mxu0 0.0
    %228 = vmatpush2.xpose.msra.mxu0 0.0
    %229 = vmatprep.subr.mxu0 0.0
    %230 = vmatpush2.xpose.msra.mxu0 0.0
    %231 = vmatprep.subr.mxu0 0.0
    %232 = vmatpush2.xpose.msra.mxu0 0.0
    %233 = vmatprep.subr.mxu0 0.0
    %234 = vmatpush2.xpose.msra.mxu0 0.0
    %235 = vmatprep.subr.mxu0 0.0
    %236 = vmatpush2.xpose.msra.mxu0 0.0
    %237 = vmatprep.subr.mxu0 0.0
    %238 = vmatpush2.xpose.msra.mxu0 0.0
    %239 = vmatprep.subr.mxu0 0.0
    %240 = vmatpush2.xpose.msra.mxu0 0.0
    %241 = vmatprep.subr.mxu0 0.0
    %242 = vmatpush2.xpose.msra.mxu0 0.0
    %243 = vmatprep.subr.mxu0 0.0
    %244 = vmatpush2.xpose.msra.mxu0 0.0
    %245 = vmatprep.subr.mxu0 0.0
    %246 = vmatpush2.xpose.msra.mxu0 0.0
    %247 = vmatprep.subr.mxu0 0.0
    %248 = vmatpush2.xpose.msra.mxu0 0.0
    %249 = vmatprep.subr.mxu0 0.0
    %250 = vmatpush2.xpose.msra.mxu0 0.0
    %251 = vmatprep.mubr.f32.mxu0 %v41
    %252 = vmatmul.mubr.f32.gmra.mxu0 %v32
    %v253 = vpop.f32.mrf.mxu0
    %v254 = vadd.f32 %v184, %v253
    %v255 = vpop.f32.mrf.mxu0
    %256 = vdwg.mxu0
    %257 = vmatprep.subr.mxu0 0.0
    %258 = vmatpush1.xpose.msra.mxu0 0.0
    %259 = vmatprep.subr.mxu0 0.0
    %260 = vmatpush1.xpose.msra.mxu0 0.0
    %261 = vmatprep.subr.mxu0 0.0
    %262 = vmatpush1.xpose.msra.mxu0 0.0
    %263 = vmatprep.subr.mxu0 0.0
    %264 = vmatpush1.xpose.msra.mxu0 0.0
    %265 = vmatprep.subr.mxu0 0.0
    %266 = vmatpush1.xpose.msra.mxu0 0.0
    %267 = vmatprep.subr.mxu0 0.0
    %268 = vmatpush1.xpose.msra.mxu0 0.0
    %269 = vmatprep.subr.mxu0 0.0
    %270 = vmatpush1.xpose.msra.mxu0 0.0
    %271 = vmatprep.subr.mxu0 0.0
    %272 = vmatpush1.xpose.msra.mxu0 0.0
    %273 = vmatprep.subr.mxu0 0.0
    %274 = vmatpush1.xpose.msra.mxu0 0.0
    %275 = vmatprep.subr.mxu0 0.0
    %276 = vmatpush1.xpose.msra.mxu0 0.0
    %277 = vmatprep.subr.mxu0 0.0
    %278 = vmatpush1.xpose.msra.mxu0 0.0
    %279 = vmatprep.subr.mxu0 0.0
    %280 = vmatpush1.xpose.msra.mxu0 0.0
    %281 = vmatprep.subr.mxu0 0.0
    %282 = vmatpush1.xpose.msra.mxu0 0.0
    %283 = vmatprep.subr.mxu0 0.0
    %284 = vmatpush1.xpose.msra.mxu0 0.0
    %285 = vmatprep.subr.mxu0 0.0
    %286 = vmatpush1.xpose.msra.mxu0 0.0
    %287 = vmatprep.subr.mxu0 %v42
    %288 = vmatpush1.xpose.msra.mxu0 %v33
    %289 = vmatprep.subr.mxu0 0.0
    %290 = vmatpush2.xpose.msra.mxu0 0.0
    %291 = vmatprep.subr.mxu0 0.0
    %292 = vmatpush2.xpose.msra.mxu0 0.0
    %293 = vmatprep.subr.mxu0 0.0
    %294 = vmatpush2.xpose.msra.mxu0 0.0
    %295 = vmatprep.subr.mxu0 0.0
    %296 = vmatpush2.xpose.msra.mxu0 0.0
    %297 = vmatprep.subr.mxu0 0.0
    %298 = vmatpush2.xpose.msra.mxu0 0.0
    %299 = vmatprep.subr.mxu0 0.0
    %300 = vmatpush2.xpose.msra.mxu0 0.0
    %301 = vmatprep.subr.mxu0 0.0
    %302 = vmatpush2.xpose.msra.mxu0 0.0
    %303 = vmatprep.subr.mxu0 0.0
    %304 = vmatpush2.xpose.msra.mxu0 0.0
    %305 = vmatprep.subr.mxu0 0.0
    %306 = vmatpush2.xpose.msra.mxu0 0.0
    %307 = vmatprep.subr.mxu0 0.0
    %308 = vmatpush2.xpose.msra.mxu0 0.0
    %309 = vmatprep.subr.mxu0 0.0
    %310 = vmatpush2.xpose.msra.mxu0 0.0
    %311 = vmatprep.subr.mxu0 0.0
    %312 = vmatpush2.xpose.msra.mxu0 0.0
    %313 = vmatprep.subr.mxu0 0.0
    %314 = vmatpush2.xpose.msra.mxu0 0.0
    %315 = vmatprep.subr.mxu0 0.0
    %316 = vmatpush2.xpose.msra.mxu0 0.0
    %317 = vmatprep.subr.mxu0 0.0
    %318 = vmatpush2.xpose.msra.mxu0 0.0
    %319 = vmatprep.subr.mxu0 0.0
    %320 = vmatpush2.xpose.msra.mxu0 0.0
    %321 = vmatprep.mubr.f32.mxu0 %v42
    %322 = vmatmul.mubr.f32.gmra.mxu0 %v33
    %v323 = vpop.f32.mrf.mxu0
    %v324 = vadd.f32 %v254, %v323
    %v325 = vpop.f32.mrf.mxu0
    %326 = vdwg.mxu0
    %v327 = vadd.f32 %v34, %v324
    %vm328 = vcmask 27648
    %329 = vst.msk [vmem:[#allocation2] sm:$0xf] %vm328, %v327
    // Predicated region
    $region18: #{tpu_custom_call.1} parent=1 // pred_check
      %p330 = pneg %p24
    $region19: #{tpu_custom_call.1} parent=1 // pred_check_branch
      %332 = sbr.rel (%p330) target = $region21
    $region20: #{tpu_custom_call.1} parent=1 // pred_region
      %v333 = vld [vmem:[#allocation2] sm:$0xf]
      %v334 = vlaneseq
      %v335 = vshrl.u32 %v334, 7
      %v336 = vlaneseq
      %v337 = vand.u32 %v336, 127
      %vm338 = vcmp.eq.s32.totalorder %v335, %v337
      %v339 = vsel %vm338, %v333, 0.0
      %v340 = vsel %vm328, %v339, 0.0
      %341 = vadd.xlane.f32.xlu0 %v340
      %v342 = vpop.xlane.xlu0 %341
      %343 = vxpose.xlu0.b32.start [1/16] %v342, 128
      %344 = vxpose.xlu0.b32.cont [2/16] 0.0, 128
      %345 = vxpose.xlu0.b32.cont [3/16] 0.0, 128
      %346 = vxpose.xlu0.b32.cont [4/16] 0.0, 128
      %347 = vxpose.xlu0.b32.cont [5/16] 0.0, 128
      %348 = vxpose.xlu0.b32.cont [6/16] 0.0, 128
      %349 = vxpose.xlu0.b32.cont [7/16] 0.0, 128
      %350 = vxpose.xlu0.b32.cont [8/16] 0.0, 128
      %351 = vxpose.xlu0.b32.cont [9/16] 0.0, 128
      %352 = vxpose.xlu0.b32.cont [10/16] 0.0, 128
      %353 = vxpose.xlu0.b32.cont [11/16] 0.0, 128
      %354 = vxpose.xlu0.b32.cont [12/16] 0.0, 128
      %355 = vxpose.xlu0.b32.cont [13/16] 0.0, 128
      %356 = vxpose.xlu0.b32.cont [14/16] 0.0, 128
      %357 = vxpose.xlu0.b32.cont [15/16] 0.0, 128
      %358 = vxpose.xlu0.b32.end [16/16] 0.0, 128
      %v359 = vpop.trf.xlu0
      %v360 = vpop.trf.xlu0
      %v361 = vpop.trf.xlu0
      %v362 = vpop.trf.xlu0
      %v363 = vpop.trf.xlu0
      %v364 = vpop.trf.xlu0
      %v365 = vpop.trf.xlu0
      %v366 = vpop.trf.xlu0
      %v367 = vpop.trf.xlu0
      %v368 = vpop.trf.xlu0
      %v369 = vpop.trf.xlu0
      %v370 = vpop.trf.xlu0
      %v371 = vpop.trf.xlu0
      %v372 = vpop.trf.xlu0
      %v373 = vpop.trf.xlu0
      %v374 = vpop.trf.xlu0
      %v375 = vlaneseq
      %v376 = vshrl.u32 %v375, 7
      %v377 = vsub.s32 0, %v376
      %v378 = vrot.slane %v359, %v377
      %v379 = vadd.f32 %v342, %v378
      %v380 = vmul.f32 %v333, 2.0
      %v381 = vsub.f32 %v379, %v380
      %v382 = vmul.f32 %v381, 0.0009765625
      %v383 = vmax.f32 %v382, 0.0
      %v384 = vld [vmem:[%s1] sm:$0x1]
      %385 = vxpose.xlu0.b32.start [1/16] %v384, 128
      %386 = vxpose.xlu0.b32.cont [2/16] 0, 128
      %387 = vxpose.xlu0.b32.cont [3/16] 0, 128
      %388 = vxpose.xlu0.b32.cont [4/16] 0, 128
      %389 = vxpose.xlu0.b32.cont [5/16] 0, 128
      %390 = vxpose.xlu0.b32.cont [6/16] 0, 128
      %391 = vxpose.xlu0.b32.cont [7/16] 0, 128
      %392 = vxpose.xlu0.b32.cont [8/16] 0, 128
      %393 = vxpose.xlu0.b32.cont [9/16] 0, 128
      %394 = vxpose.xlu0.b32.cont [10/16] 0, 128
      %395 = vxpose.xlu0.b32.cont [11/16] 0, 128
      %396 = vxpose.xlu0.b32.cont [12/16] 0, 128
      %397 = vxpose.xlu0.b32.cont [13/16] 0, 128
      %398 = vxpose.xlu0.b32.cont [14/16] 0, 128
      %399 = vxpose.xlu0.b32.cont [15/16] 0, 128
      %400 = vxpose.xlu0.b32.end [16/16] 0, 128
      %v401 = vpop.trf.xlu0
      %v402 = vpop.trf.xlu0
      %v403 = vpop.trf.xlu0
      %v404 = vpop.trf.xlu0
      %v405 = vpop.trf.xlu0
      %v406 = vpop.trf.xlu0
      %v407 = vpop.trf.xlu0
      %v408 = vpop.trf.xlu0
      %v409 = vpop.trf.xlu0
      %v410 = vpop.trf.xlu0
      %v411 = vpop.trf.xlu0
      %v412 = vpop.trf.xlu0
      %v413 = vpop.trf.xlu0
      %v414 = vpop.trf.xlu0
      %v415 = vpop.trf.xlu0
      %v416 = vpop.trf.xlu0
      %417 = vset.pattern.permute.xlu0 0
      %418 = vperm.xlu0 %417, %v401
      %v419 = vpop.permute.xlu0 %418
      %v420 = vlaneseq
      %v421 = vshrl.u32 %v420, 7
      %v422 = vsub.s32 0, %v421
      %v423 = vrot.slane %v384, %v422
      %vm424 = vcmp.eq.s32.totalorder %v419, %v423
      %v425 = vsel %vm424, 1, 0
      %v426 = vcvt.s32.f32 %v425
      %vm427 = vcmp.gt.s32.totalorder %v337, %v335
      %v428 = vsel %vm427, 1, 0
      %v429 = vcvt.s32.f32 %v428
      %v430 = vmul.f32 %v426, %v383
      %v431 = vsub.f32 1.0, %v426
      %v432 = vsub.f32 2.0, %v383
      %v433 = vmax.f32 %v432, 0.0
      %v434 = vmul.f32 %v431, %v433
      %v435 = vadd.f32 %v430, %v434
      %v436 = vmul.f32 %v429, %v435
      %v437 = vsel %vm328, %v436, 0.0
      %438 = vadd.xlane.f32.xlu0 %v437
      %v439 = vpop.xlane.xlu0 %438
      %v440 = vrot.slane %v439, 4
      %v441 = vadd.f32 %v439, %v440
      %v442 = vrot.slane %v441, 2
      %v443 = vadd.f32 %v441, %v442
      %v444 = vrot.slane %v443, 1
      %v445 = vadd.f32 %v443, %v444
      %s446 = vtos %v445
      %s447 = smul.f32 %s446, 2.0
      %v448 = vrcp.pop 12.0
      %s449 = vtos %v448
      %s450 = smul.f32 %s447, %s449
      %s451 = scalar_lea.smem [#allocation6], 0
      %452 = sst [smem:[%s451]] %s450
    $region21: #{tpu_custom_call.1} parent=1 // pred_fallthru
      _
    // Predicated region
    $region22: #{tpu_custom_call.1} parent=1 // pred_check
      _
    $region23: #{tpu_custom_call.1} parent=1 // pred_check_branch
      %454 = sbr.rel (0) target = $region25
    $region24: #{tpu_custom_call.1} parent=1 // pred_region
      %s456 = ssub.s32 16, 16
      %457 = vsyncadd [#allocation5], %s456
      %460 = dma.smem_to_hbm [#allocation6], 16, %s2, [#allocation5]
    $region25: #{tpu_custom_call.1} parent=1 // pred_fallthru
      _
    // Predicated region
    $region26: #{tpu_custom_call.1} parent=1 // pred_check
      _
    $region27: #{tpu_custom_call.1} parent=1 // pred_check_branch
      %462 = sbr.rel (0) target = $region29
    $region28: #{tpu_custom_call.1} parent=1 // pred_region
      %463 = dma.done [#allocation5], 16
    $region29: #{tpu_custom_call.1} parent=1 // pred_fallthru
      _
    %464 = sfence
    %465 = vsyncpa [#allocation4], 1
    %466 = vsyncpa [#allocation5], 1

</llo_original>
